<compile_context>
chip_gen: v7x
topology: tpu7x:2x2x1
jax: 0.10.0
libtpu: 0.0.40
codegen_flags: <defaults>
</compile_context>

<pallas_src>
import math
from functools import partial

import jax
import jax.numpy as jnp
from jax.experimental import pallas as pl
from jax.experimental.pallas import tpu as pltpu


# ------------------------------ Pallas kernel ------------------------------

def gmm_mlp_kernel(x_ref, w1_ref, b1_ref, w2_ref, b2_ref, o_ref):
    """One batch tile of Linear -> Tanh -> Linear -> Softmax.

    x_ref  : (tile, D_in)  bf16
    w1_ref : (D_in, Hp)    bf16  (hidden axis zero-padded to 128 lanes)
    b1_ref : (1, Hp)       f32
    w2_ref : (Hp, Kp)      bf16  (class axis zero-padded to 128 lanes)
    b2_ref : (1, Kp)       f32   (padded classes biased to -1e30 -> prob 0)
    o_ref  : (tile, K)     f32   (only the K real classes are written out)
    """
    # Layer 1: bf16 MXU matmul with f32 accumulation; bias + tanh in f32.
    h = jnp.dot(x_ref[...], w1_ref[...], preferred_element_type=jnp.float32)
    h = jnp.tanh(h + b1_ref[...])

    # Layer 2: bf16 MXU matmul (f32 accumulate) + bias, then stable softmax over
    # the padded class axis (padded logits are -1e30 -> exp underflows to 0).
    logits = jnp.dot(h.astype(w2_ref.dtype), w2_ref[...],
                     preferred_element_type=jnp.float32) + b2_ref[...]
    m = jnp.max(logits, axis=-1, keepdims=True)
    e = jnp.exp(logits - m)
    denom = jnp.sum(e, axis=-1, keepdims=True)
    # EUP approximate reciprocal + one Newton refinement (row sums ~1e-6 of 1).
    r = pl.reciprocal(denom, approx=True)
    r = r * (2.0 - denom * r)
    probs = e * r

    # Store only the real class columns: ~16x fewer HBM write bytes than the
    # padded slab and no post-kernel slice is needed.
    k = o_ref.shape[-1]
    o_ref[...] = probs[:, :k].astype(o_ref.dtype)


# ------------------------------ Tiling helpers ------------------------------

def _round_up(n, m):
    return ((n + m - 1) // m) * m


def _choose_tiling(B):
    """Pick (batch_tile, grid_len).

    * tile is a multiple of 16 (bf16 packs 16 sublanes per vreg),
    * largest tile (<=1024 rows) that still leaves ~4 grid steps (pipelining +
      even split over v7x's 2 TCs); for B >= 512 the tile never drops below 256
      so the MXU M-dimension stays well filled on v6e/v7x,
    * odd multi-step grids are rounded up to even (rows are zero-padded).
    Per-tile VMEM is < 1.5 MiB even at 1024 rows, so VMEM never binds here.
    """
    tile = max(16, min(1024, ((B // 4) // 16) * 16))
    if B >= 512:
        tile = max(tile, 256)
    grid = pl.cdiv(B, tile)
    if grid > 1 and grid % 2:
        grid += 1                      # even grid -> both v7x TCs get work
    return tile, grid


# --------------------------- One-time param prep ---------------------------

def prepare_gmm_params(w1, b1, w2, b2, *, compute_dtype=jnp.bfloat16):
    """Pad hidden/class axes up to full 128-lane vregs / MXU columns and cast
    matmul operands to bf16.  Done ONCE at parameter creation time (hoisted out
    of the per-forward-call path)."""
    D_in, H = w1.shape
    K = w2.shape[1]
    Hp = _round_up(H, 128)
    Kp = _round_up(K, 128)

    w1p = jnp.zeros((D_in, Hp), jnp.float32).at[:, :H].set(w1)
    b1p = jnp.zeros((1, Hp), jnp.float32).at[:, :H].set(b1.reshape(1, H))
    w2p = jnp.zeros((Hp, Kp), jnp.float32).at[:H, :K].set(w2)
    # Padded classes get a huge negative bias -> softmax prob exactly 0.
    b2p = jnp.full((1, Kp), -1e30, jnp.float32).at[:, :K].set(b2.reshape(1, K))

    params = (w1p.astype(compute_dtype), b1p, w2p.astype(compute_dtype), b2p)
    return params, K


# --------------------------------- Forward ---------------------------------

@partial(jax.jit, static_argnames=("num_classes",))
def gmm_forward(x, params, *, num_classes):
    """softmax(tanh(x @ W1 + b1) @ W2 + b2) as a single fused Pallas kernel."""
    w1p, b1p, w2p, b2p = params
    B, D_in = x.shape
    Hp = w1p.shape[1]
    Kp = w2p.shape[1]
    K = num_classes

    tile, grid = _choose_tiling(B)
    Bp = tile * grid

    x_c = x.astype(w1p.dtype)                       # halves x DMA bytes
    if Bp != B:                                     # zero-pad remainder rows
        x_c = jnp.zeros((Bp, D_in), x_c.dtype).at[:B].set(x_c)

    out = pl.pallas_call(
        gmm_mlp_kernel,
        out_shape=jax.ShapeDtypeStruct((Bp, K), jnp.float32),
        grid_spec=pltpu.PrefetchScalarGridSpec(
            num_scalar_prefetch=0,
            grid=(grid,),
            in_specs=[
                pl.BlockSpec((tile, D_in), lambda i: (i, 0)),   # x tile
                pl.BlockSpec((D_in, Hp), lambda i: (0, 0)),     # W1 (resident)
                pl.BlockSpec((1, Hp), lambda i: (0, 0)),        # b1 (resident)
                pl.BlockSpec((Hp, Kp), lambda i: (0, 0)),       # W2 (resident)
                pl.BlockSpec((1, Kp), lambda i: (0, 0)),        # b2 (resident)
            ],
            # Block last dim == full array last dim (K), so the (8,128) rule is
            # satisfied while writing only the real classes to HBM.
            out_specs=pl.BlockSpec((tile, K), lambda i: (i, 0)),
        ),
        compiler_params=pltpu.CompilerParams(
            dimension_semantics=("parallel",),
            vmem_limit_bytes=32 * 1024 * 1024,      # safe on v5e/v6e/v7x
        ),
    )(x_c, w1p, b1p, w2p, b2p)

    return out[:B] if Bp != B else out


# ---------------------------- Parameter init -------------------------------

def init_linear(key, fan_in, fan_out):
    """Mimics torch.nn.Linear defaults: U(-1/sqrt(in), 1/sqrt(in))."""
    kw, kb = jax.random.split(key)
    bound = 1.0 / math.sqrt(fan_in)
    # stored as (in, out) so the kernel computes x @ W directly
    w = jax.random.uniform(kw, (fan_in, fan_out), jnp.float32, -bound, bound)
    b = jax.random.uniform(kb, (1, fan_out), jnp.float32, -bound, bound)
    return w, b


# -------------------------- Reference (pure JAX) ----------------------------

def gmm_ref(x, w1, b1, w2, b2, compute_dtype=jnp.float32):
    cd = compute_dtype
    h = jnp.tanh(jnp.dot(x.astype(cd), w1.astype(cd),
                         preferred_element_type=jnp.float32) + b1.reshape(1, -1))
    logits = jnp.dot(h.astype(cd), w2.astype(cd),
                     preferred_element_type=jnp.float32) + b2.reshape(1, -1)
    return jax.nn.softmax(logits, axis=-1)


if __name__ == "__main__":
    # layers = [(32, 64, Tanh), (64, 8, Softmax)]  ->  K = 8
    B, D_IN, HIDDEN, K = 1024, 32, 64, 8   # -> 4 grid steps of 256 rows

    key = jax.random.PRNGKey(0)
    kx, k1, k2 = jax.random.split(key, 3)

    x = jax.random.normal(kx, (B, D_IN), jnp.float32)
    w1, b1 = init_linear(k1, D_IN, HIDDEN)
    w2, b2 = init_linear(k2, HIDDEN, K)

    # One-time parameter preparation (padding + bf16 casts hoisted out of the
    # per-call path).
    params, num_classes = prepare_gmm_params(w1, b1, w2, b2)

    out = gmm_forward(x, params, num_classes=num_classes)
    out = jax.block_until_ready(out)

    ref_matched = gmm_ref(x, w1, b1, w2, b2, compute_dtype=jnp.bfloat16)
    ref_f32 = gmm_ref(x, w1, b1, w2, b2, compute_dtype=jnp.float32)

    assert out.shape == (B, K)
    assert jnp.allclose(out, ref_matched, atol=1e-4, rtol=1e-4), \
        "mismatch vs precision-matched JAX reference"
    assert jnp.allclose(out, ref_f32, atol=3e-2, rtol=3e-2), \
        "mismatch vs full-f32 JAX reference"
    assert jnp.allclose(jnp.sum(out, axis=-1), 1.0, atol=1e-5), \
        "softmax rows must sum to 1"

    print("KERNEL_OK")
</pallas_src>

<mosaic_0001>
module attributes {stable_mosaic.version = 11 : i64} {
  func.func @gmm_mlp_kernel(%arg0: i32, %arg1: memref<256x32xbf16, #tpu.memory_space<vmem>>, %arg2: memref<32x128xbf16, #tpu.memory_space<vmem>>, %arg3: memref<1x128xf32, #tpu.memory_space<vmem>>, %arg4: memref<128x128xbf16, #tpu.memory_space<vmem>>, %arg5: memref<1x128xf32, #tpu.memory_space<vmem>>, %arg6: memref<256x8xf32, #tpu.memory_space<vmem>>) attributes {dimension_semantics = [#tpu.dimension_semantics<parallel>], iteration_bounds = array<i64: 4>, scalar_prefetch = 0 : i64, scratch_operands = 0 : i64, tpu.core_type = #tpu.core_type<tc>, window_params = [{transform_indices = @transform_0, window_bounds = array<i64: 256, 32>}, {pipeline_mode = #tpu.pipeline_mode<synchronous>, transform_indices = @transform_1, window_bounds = array<i64: 32, 128>}, {pipeline_mode = #tpu.pipeline_mode<synchronous>, transform_indices = @transform_2, window_bounds = array<i64: 1, 128>}, {pipeline_mode = #tpu.pipeline_mode<synchronous>, transform_indices = @transform_3, window_bounds = array<i64: 128, 128>}, {pipeline_mode = #tpu.pipeline_mode<synchronous>, transform_indices = @transform_4, window_bounds = array<i64: 1, 128>}, {transform_indices = @transform_5, window_bounds = array<i64: 256, 8>}]} {
    %c0 = arith.constant 0 : index
    %c0_0 = arith.constant 0 : index
    %0 = vector.load %arg1[%c0, %c0_0] : memref<256x32xbf16, #tpu.memory_space<vmem>>, vector<256x32xbf16>
    %c0_1 = arith.constant 0 : index
    %c0_2 = arith.constant 0 : index
    %1 = vector.load %arg2[%c0_1, %c0_2] : memref<32x128xbf16, #tpu.memory_space<vmem>>, vector<32x128xbf16>
    %cst = arith.constant dense<0.000000e+00> : vector<256x128xf32>
    %2 = tpu.matmul %0, %1, %cst {dimension_numbers = #tpu.dot_dimension_numbers<[1], [0], [0], [1], [0, 0, 1, 1], [], []>} : vector<256x32xbf16>, vector<32x128xbf16>, vector<256x128xf32> -> vector<256x128xf32>
    %c0_3 = arith.constant 0 : index
    %c0_4 = arith.constant 0 : index
    %3 = vector.load %arg3[%c0_3, %c0_4] : memref<1x128xf32, #tpu.memory_space<vmem>>, vector<1x128xf32>
    %4 = vector.broadcast %3 : vector<1x128xf32> to vector<256x128xf32>
    %5 = arith.addf %2, %4 : vector<256x128xf32>
    %6 = math.tanh %5 : vector<256x128xf32>
    %7 = arith.truncf %6 : vector<256x128xf32> to vector<256x128xbf16>
    %c0_5 = arith.constant 0 : index
    %c0_6 = arith.constant 0 : index
    %8 = vector.load %arg4[%c0_5, %c0_6] : memref<128x128xbf16, #tpu.memory_space<vmem>>, vector<128x128xbf16>
    %cst_7 = arith.constant dense<0.000000e+00> : vector<256x128xf32>
    %9 = tpu.matmul %7, %8, %cst_7 {dimension_numbers = #tpu.dot_dimension_numbers<[1], [0], [0], [1], [0, 0, 1, 1], [], []>} : vector<256x128xbf16>, vector<128x128xbf16>, vector<256x128xf32> -> vector<256x128xf32>
    %c0_8 = arith.constant 0 : index
    %c0_9 = arith.constant 0 : index
    %10 = vector.load %arg5[%c0_8, %c0_9] : memref<1x128xf32, #tpu.memory_space<vmem>>, vector<1x128xf32>
    %11 = vector.broadcast %10 : vector<1x128xf32> to vector<256x128xf32>
    %12 = arith.addf %9, %11 : vector<256x128xf32>
    %cst_10 = arith.constant dense<0xFF800000> : vector<256xf32>
    %13 = vector.multi_reduction <maximumf>, %12, %cst_10 [1] : vector<256x128xf32> to vector<256xf32>
    %14 = vector.shape_cast %13 : vector<256xf32> to vector<256x1xf32>
    %15 = vector.broadcast %14 : vector<256x1xf32> to vector<256x128xf32>
    %16 = arith.subf %12, %15 : vector<256x128xf32>
    %17 = math.exp %16 : vector<256x128xf32>
    %cst_11 = arith.constant dense<0.000000e+00> : vector<256xf32>
    %18 = vector.multi_reduction <add>, %17, %cst_11 [1] : vector<256x128xf32> to vector<256xf32>
    %19 = vector.shape_cast %18 : vector<256xf32> to vector<256x1xf32>
    %20 = tpu.reciprocal %19 {approx = true} : vector<256x1xf32> -> vector<256x1xf32>
    %21 = arith.mulf %19, %20 : vector<256x1xf32>
    %cst_12 = arith.constant 2.000000e+00 : f32
    %22 = vector.broadcast %cst_12 : f32 to vector<256x1xf32>
    %23 = arith.subf %22, %21 : vector<256x1xf32>
    %24 = arith.mulf %20, %23 : vector<256x1xf32>
    %25 = vector.broadcast %24 : vector<256x1xf32> to vector<256x128xf32>
    %26 = arith.mulf %17, %25 : vector<256x128xf32>
    %27 = vector.extract_strided_slice %26 {offsets = [0, 0], sizes = [256, 8], strides = [1, 1]} : vector<256x128xf32> to vector<256x8xf32>
    %c0_13 = arith.constant 0 : index
    %c0_14 = arith.constant 0 : index
    %28 = vector.load %arg6[%c0_13, %c0_14] : memref<256x8xf32, #tpu.memory_space<vmem>>, vector<256x8xf32>
    tpu.vector_store %arg6[%c0_13, %c0_14], %27 {strides = array<i32>} : memref<256x8xf32, #tpu.memory_space<vmem>>, vector<256x8xf32>,
    return
  }
  func.func @transform_0(%arg0: i32) -> (i32, i32) {
    %c0_i32 = arith.constant 0 : i32
    %c0_i32_0 = arith.constant 0 : i32
    return %arg0, %c0_i32 : i32, i32
  }
  func.func @transform_1(%arg0: i32) -> (i32, i32) {
    %c0_i32 = arith.constant 0 : i32
    %c0_i32_0 = arith.constant 0 : i32
    %c0_i32_1 = arith.constant 0 : i32
    return %c0_i32, %c0_i32_0 : i32, i32
  }
  func.func @transform_2(%arg0: i32) -> (i32, i32) {
    %c0_i32 = arith.constant 0 : i32
    %c0_i32_0 = arith.constant 0 : i32
    %c0_i32_1 = arith.constant 0 : i32
    return %c0_i32, %c0_i32_0 : i32, i32
  }
  func.func @transform_3(%arg0: i32) -> (i32, i32) {
    %c0_i32 = arith.constant 0 : i32
    %c0_i32_0 = arith.constant 0 : i32
    %c0_i32_1 = arith.constant 0 : i32
    return %c0_i32, %c0_i32_0 : i32, i32
  }
  func.func @transform_4(%arg0: i32) -> (i32, i32) {
    %c0_i32 = arith.constant 0 : i32
    %c0_i32_0 = arith.constant 0 : i32
    %c0_i32_1 = arith.constant 0 : i32
    return %c0_i32, %c0_i32_0 : i32, i32
  }
  func.func @transform_5(%arg0: i32) -> (i32, i32) {
    %c0_i32 = arith.constant 0 : i32
    %c0_i32_0 = arith.constant 0 : i32
    return %arg0, %c0_i32 : i32, i32
  }
}

</mosaic_0001>

<llo_original>
// kernel: gmm_forward.1
$region0: #{gmm_forward.1}
  #allocation0 [shape = 'u32[]', space=smem, size = 0x4, offset = 0x4, fixed_abs, tag = 'smem constant byte address 0x4 - core index']
  #allocation1 [shape = 'u32[144,128]{1,0:T(1,128)}', space=vmem, size = 0x12000, scoped, tag = 'internal scratch']
  %s0 = inlined_call_operand.vmem [shape: bf16[1024,32], index: 0, kind: input, shape index: {}]
  %s1 = inlined_call_operand.vmem [shape: bf16[32,128], index: 1, kind: input, shape index: {}]
  %s2 = inlined_call_operand.vmem [shape: f32[1,128], index: 2, kind: input, shape index: {}]
  %s3 = inlined_call_operand.vmem [shape: bf16[128,128], index: 3, kind: input, shape index: {}]
  %s4 = inlined_call_operand.vmem [shape: f32[1,128], index: 4, kind: input, shape index: {}]
  %s5 = inlined_call_operand.vmem [shape: f32[1024,8], index: 5, kind: output, shape index: {}]
  %s6 = sld [smem:[#allocation0]]
  $region53: #{gmm_forward.1} parent=0
    _
  %s8 = ssub.s32 1, %s6
  %s9 = scalar_select 0, %s8, %s6
  loop: start=0, step=1, limit=6
  $region2: #{gmm_forward.1} parent=0 // loop_pre_header
    _
  $region3: #{gmm_forward.1} parent=0 // loop_header
    %s11 = sphi 0, %s15
    %p12 = scmp.ge.s32.totalorder %s11, 6
    %s21 = sphi 0, %s23
    %s24 = sphi 0, %s21
    %s25 = sphi 0, %s24
    %s41 = sphi 0, %s25
    %s45 = sphi 0, %s45
    %s47 = sphi 0, %s45
    %s48 = sphi 0, %s47
    %s62 = sphi 0, %s48
    %s66 = sphi 0, %s66
    %s68 = sphi 0, %s66
    %s69 = sphi 0, %s68
    %s83 = sphi 0, %s69
    %s87 = sphi 0, %s87
    %s89 = sphi 0, %s87
    %s90 = sphi 0, %s89
    %s104 = sphi 0, %s90
    %s108 = sphi 0, %s108
    %s110 = sphi 0, %s108
    %s111 = sphi 0, %s110
    %s125 = sphi 0, %s111
    %s131 = sphi 0, %s133
    %s134 = sphi 0, %s131
    %s135 = sphi 0, %s134
    %s151 = sphi 0, %s135
  $region4: #{gmm_forward.1} parent=0 // loop_header_branch
    %14 = sbr.rel (%p12) target = $region8
  $region5: #{gmm_forward.1} parent=0 // loop_body
    %s16 = ssub.s32 %s11, 1
    %s17 = ssub.s32 %s11, 2
    %s18 = sadd.s32 %s11, 1
    %s19 = ssub.s32 %s11, %s18
    %p20 = scmp.eq.s32.totalorder %s19, 0
    %s22 = sadd.s32 %s21, 1
    %s23 = scalar_select %p20, %s21, %s22
    %p26 = pneg %p20
    %p27 = scmp.eq.s32.totalorder %s11, 3
    %p28 = por %p26, %p27
    %p29 = scmp.ne.s32.totalorder %s21, %s24
    %p30 = scmp.eq.s32.totalorder %s11, 0
    %p31 = por %p29, %p30
    %p32 = scmp.ne.s32.totalorder %s21, %s24
    %p33 = scmp.eq.s32.totalorder %s16, 3
    %p34 = por %p32, %p33
    %p35 = scmp.ne.s32.totalorder %s24, %s25
    %p36 = scmp.eq.s32.totalorder %s16, 0
    %p37 = por %p35, %p36
    %p38 = scmp.ne.s32.totalorder %s24, %s25
    %p39 = scmp.eq.s32.totalorder %s17, 3
    %p40 = por %p38, %p39
    %p42 = scmp.ne.s32.totalorder %s25, %s41
    %p43 = scmp.eq.s32.totalorder %s17, 0
    %p44 = por %p42, %p43
    %s46 = sadd.s32 %s45, 1
    %p49 = scmp.eq.s32.totalorder %s11, 3
    %p50 = scmp.ne.s32.totalorder %s45, %s47
    %p51 = scmp.eq.s32.totalorder %s11, 0
    %p52 = por %p50, %p51
    %p53 = scmp.ne.s32.totalorder %s45, %s47
    %p54 = scmp.eq.s32.totalorder %s16, 3
    %p55 = por %p53, %p54
    %p56 = scmp.ne.s32.totalorder %s47, %s48
    %p57 = scmp.eq.s32.totalorder %s16, 0
    %p58 = por %p56, %p57
    %p59 = scmp.ne.s32.totalorder %s47, %s48
    %p60 = scmp.eq.s32.totalorder %s17, 3
    %p61 = por %p59, %p60
    %p63 = scmp.ne.s32.totalorder %s48, %s62
    %p64 = scmp.eq.s32.totalorder %s17, 0
    %p65 = por %p63, %p64
    %s67 = sadd.s32 %s66, 1
    %p70 = scmp.eq.s32.totalorder %s11, 3
    %p71 = scmp.ne.s32.totalorder %s66, %s68
    %p72 = scmp.eq.s32.totalorder %s11, 0
    %p73 = por %p71, %p72
    %p74 = scmp.ne.s32.totalorder %s66, %s68
    %p75 = scmp.eq.s32.totalorder %s16, 3
    %p76 = por %p74, %p75
    %p77 = scmp.ne.s32.totalorder %s68, %s69
    %p78 = scmp.eq.s32.totalorder %s16, 0
    %p79 = por %p77, %p78
    %p80 = scmp.ne.s32.totalorder %s68, %s69
    %p81 = scmp.eq.s32.totalorder %s17, 3
    %p82 = por %p80, %p81
    %p84 = scmp.ne.s32.totalorder %s69, %s83
    %p85 = scmp.eq.s32.totalorder %s17, 0
    %p86 = por %p84, %p85
    %s88 = sadd.s32 %s87, 1
    %p91 = scmp.eq.s32.totalorder %s11, 3
    %p92 = scmp.ne.s32.totalorder %s87, %s89
    %p93 = scmp.eq.s32.totalorder %s11, 0
    %p94 = por %p92, %p93
    %p95 = scmp.ne.s32.totalorder %s87, %s89
    %p96 = scmp.eq.s32.totalorder %s16, 3
    %p97 = por %p95, %p96
    %p98 = scmp.ne.s32.totalorder %s89, %s90
    %p99 = scmp.eq.s32.totalorder %s16, 0
    %p100 = por %p98, %p99
    %p101 = scmp.ne.s32.totalorder %s89, %s90
    %p102 = scmp.eq.s32.totalorder %s17, 3
    %p103 = por %p101, %p102
    %p105 = scmp.ne.s32.totalorder %s90, %s104
    %p106 = scmp.eq.s32.totalorder %s17, 0
    %p107 = por %p105, %p106
    %s109 = sadd.s32 %s108, 1
    %p112 = scmp.eq.s32.totalorder %s11, 3
    %p113 = scmp.ne.s32.totalorder %s108, %s110
    %p114 = scmp.eq.s32.totalorder %s11, 0
    %p115 = por %p113, %p114
    %p116 = scmp.ne.s32.totalorder %s108, %s110
    %p117 = scmp.eq.s32.totalorder %s16, 3
    %p118 = por %p116, %p117
    %p119 = scmp.ne.s32.totalorder %s110, %s111
    %p120 = scmp.eq.s32.totalorder %s16, 0
    %p121 = por %p119, %p120
    %p122 = scmp.ne.s32.totalorder %s110, %s111
    %p123 = scmp.eq.s32.totalorder %s17, 3
    %p124 = por %p122, %p123
    %p126 = scmp.ne.s32.totalorder %s111, %s125
    %p127 = scmp.eq.s32.totalorder %s17, 0
    %p128 = por %p126, %p127
    %s129 = ssub.s32 %s11, %s18
    %p130 = scmp.eq.s32.totalorder %s129, 0
    %s132 = sadd.s32 %s131, 1
    %s133 = scalar_select %p130, %s131, %s132
    %p136 = pneg %p130
    %p137 = scmp.eq.s32.totalorder %s11, 3
    %p138 = por %p136, %p137
    %p139 = scmp.ne.s32.totalorder %s131, %s134
    %p140 = scmp.eq.s32.totalorder %s11, 0
    %p141 = por %p139, %p140
    %p142 = scmp.ne.s32.totalorder %s131, %s134
    %p143 = scmp.eq.s32.totalorder %s16, 3
    %p144 = por %p142, %p143
    %p145 = scmp.ne.s32.totalorder %s134, %s135
    %p146 = scmp.eq.s32.totalorder %s16, 0
    %p147 = por %p145, %p146
    %p148 = scmp.ne.s32.totalorder %s134, %s135
    %p149 = scmp.eq.s32.totalorder %s17, 3
    %p150 = por %p148, %p149
    %p152 = scmp.ne.s32.totalorder %s135, %s151
    %p153 = scmp.eq.s32.totalorder %s17, 0
    %p154 = por %p152, %p153
    %p155 = scmp.le.s32.totalorder 1, %s11
    %p156 = scmp.lt.s32.totalorder %s11, 5
    %p157 = pnand %p155, %p156
    %p158 = pneg %p157
    // Predicated region
    $region9: #{gmm_forward.1} parent=5 // pred_check
      _
    $region10: #{gmm_forward.1} parent=5 // pred_check_branch
      %160 = sbr.rel (%p157) target = $region12
    $region11: #{gmm_forward.1} parent=5 // pred_region
      %s161 = ssub.s32 %s11, 1
      // Predicated region
      $region13: #{gmm_forward.1} parent=11 // pred_check
        %p162 = pneg %p58
      $region14: #{gmm_forward.1} parent=11 // pred_check_branch
        %164 = sbr.rel (%p162) target = $region16
      $region15: #{gmm_forward.1} parent=11 // pred_region
        _
      $region16: #{gmm_forward.1} parent=11 // pred_fallthru
        _
      // Predicated region
      $region17: #{gmm_forward.1} parent=11 // pred_check
        %p165 = pneg %p79
      $region18: #{gmm_forward.1} parent=11 // pred_check_branch
        %167 = sbr.rel (%p165) target = $region20
      $region19: #{gmm_forward.1} parent=11 // pred_region
        _
      $region20: #{gmm_forward.1} parent=11 // pred_fallthru
        _
      // Predicated region
      $region21: #{gmm_forward.1} parent=11 // pred_check
        %p168 = pneg %p100
      $region22: #{gmm_forward.1} parent=11 // pred_check_branch
        %170 = sbr.rel (%p168) target = $region24
      $region23: #{gmm_forward.1} parent=11 // pred_region
        _
      $region24: #{gmm_forward.1} parent=11 // pred_fallthru
        _
      // Predicated region
      $region25: #{gmm_forward.1} parent=11 // pred_check
        %p171 = pneg %p121
      $region26: #{gmm_forward.1} parent=11 // pred_check_branch
        %173 = sbr.rel (%p171) target = $region28
      $region27: #{gmm_forward.1} parent=11 // pred_region
        _
      $region28: #{gmm_forward.1} parent=11 // pred_fallthru
        _
    $region12: #{gmm_forward.1} parent=5 // pred_fallthru
      _
    %p174 = scmp.lt.s32.totalorder %s11, 4
    // Predicated region
    $region29: #{gmm_forward.1} parent=5 // pred_check
      %p175 = pneg %p174
    $region30: #{gmm_forward.1} parent=5 // pred_check_branch
      %177 = sbr.rel (%p175) target = $region32
    $region31: #{gmm_forward.1} parent=5 // pred_region
      // Predicated region
      $region33: #{gmm_forward.1} parent=31 // pred_check
        %p178 = pneg %p31
      $region34: #{gmm_forward.1} parent=31 // pred_check_branch
        %180 = sbr.rel (%p178) target = $region36
      $region35: #{gmm_forward.1} parent=31 // pred_region
        %s181 = smul.u32 32, %s11
        %p182 = scmp.lt.s32.totalorder %s181, 127
        %s183 = scalar_select %p182, %s181, 127
        %s184 = smul.addr %s183, 4
        %s185 = scalar_lea.vmem %s0, %s184
        %s186 = smul.u32 32, %s11
      $region36: #{gmm_forward.1} parent=31 // pred_fallthru
        _
    $region32: #{gmm_forward.1} parent=5 // pred_fallthru
      _
    %p187 = scmp.le.s32.totalorder 1, %s11
    %p188 = scmp.lt.s32.totalorder %s11, 5
    %p189 = pnand %p187, %p188
    %p190 = pneg %p189
    // Predicated region
    $region37: #{gmm_forward.1} parent=5 // pred_check
      _
    $region38: #{gmm_forward.1} parent=5 // pred_check_branch
      %192 = sbr.rel (%p189) target = $region40
    $region39: #{gmm_forward.1} parent=5 // pred_region
      %s193 = ssub.s32 %s11, 1
      %s194 = smul.u32 32, %s16
      %p195 = scmp.lt.s32.totalorder %s194, 127
      %s196 = scalar_select %p195, %s194, 127
      %s197 = smul.addr %s196, 4
      %s198 = scalar_lea.vmem %s0, %s197
      %p199 = pneg %p37
      %p200 = pneg %p34
      %p201 = pneg %p58
      %p202 = pneg %p55
      %p203 = pneg %p79
      %p204 = pneg %p76
      %p205 = pneg %p100
      %p206 = pneg %p97
      %p207 = pneg %p121
      %p208 = pneg %p118
      %p209 = pneg %p147
      %p210 = pneg %p144
      %s211 = smul.u32 32, %s16
      %p212 = scmp.lt.s32.totalorder %s211, 127
      %s213 = scalar_select %p212, %s211, 127
      %s214 = smul.addr %s213, 8
      %s215 = scalar_lea.vmem %s5, %s214
      %s216 = smul.u32 32, %s16
      %p217 = scmp.lt.s32.totalorder %s216, 127
      %s218 = scalar_select %p217, %s216, 127
      %s219 = smul.addr %s218, 4
      %s220 = scalar_lea.vmem %s0, %s219
      %s221 = smul.u32 32, %s16
      %s222 = smul.u32 32, %s16
      %p223 = scmp.lt.s32.totalorder %s222, 127
      %s224 = scalar_select %p223, %s222, 127
      %s225 = smul.addr %s224, 8
      %s226 = scalar_lea.vmem %s5, %s225
      %s227 = smul.u32 32, %s16
      %v229 = vld [vmem:[%s220] sm:$0xf]
      %v230 = vld [vmem:[%s220 + $0x4] sm:$0xf]
      %v231 = vld [vmem:[%s220 + $0x8] sm:$0xf]
      %v232 = vld [vmem:[%s220 + $0xc] sm:$0xf]
      %v233 = vld [vmem:[%s220 + $0x10] sm:$0xf]
      %v234 = vld [vmem:[%s220 + $0x14] sm:$0xf]
      %v235 = vld [vmem:[%s220 + $0x18] sm:$0xf]
      %v236 = vld [vmem:[%s220 + $0x1c] sm:$0xf]
      %v237 = vld [vmem:[%s220 + $0x20] sm:$0xf]
      %v238 = vld [vmem:[%s220 + $0x24] sm:$0xf]
      %v239 = vld [vmem:[%s220 + $0x28] sm:$0xf]
      %v240 = vld [vmem:[%s220 + $0x2c] sm:$0xf]
      %v241 = vld [vmem:[%s220 + $0x30] sm:$0xf]
      %v242 = vld [vmem:[%s220 + $0x34] sm:$0xf]
      %v243 = vld [vmem:[%s220 + $0x38] sm:$0xf]
      %v244 = vld [vmem:[%s220 + $0x3c] sm:$0xf]
      %v245 = vld [vmem:[%s220 + $0x40] sm:$0xf]
      %v246 = vld [vmem:[%s220 + $0x44] sm:$0xf]
      %v247 = vld [vmem:[%s220 + $0x48] sm:$0xf]
      %v248 = vld [vmem:[%s220 + $0x4c] sm:$0xf]
      %v249 = vld [vmem:[%s220 + $0x50] sm:$0xf]
      %v250 = vld [vmem:[%s220 + $0x54] sm:$0xf]
      %v251 = vld [vmem:[%s220 + $0x58] sm:$0xf]
      %v252 = vld [vmem:[%s220 + $0x5c] sm:$0xf]
      %v253 = vld [vmem:[%s220 + $0x60] sm:$0xf]
      %v254 = vld [vmem:[%s220 + $0x64] sm:$0xf]
      %v255 = vld [vmem:[%s220 + $0x68] sm:$0xf]
      %v256 = vld [vmem:[%s220 + $0x6c] sm:$0xf]
      %v257 = vld [vmem:[%s220 + $0x70] sm:$0xf]
      %v258 = vld [vmem:[%s220 + $0x74] sm:$0xf]
      %v259 = vld [vmem:[%s220 + $0x78] sm:$0xf]
      %v260 = vld [vmem:[%s220 + $0x7c] sm:$0xf]
      %v261 = vld [vmem:[%s1] sm:$0xf]
      %v262 = vld [vmem:[%s1 + $0x4] sm:$0xf]
      %v263 = vld [vmem:[%s1 + $0x8] sm:$0xf]
      %v264 = vld [vmem:[%s1 + $0xc] sm:$0xf]
      %v265 = vld [vmem:[%s2] sm:$0x1]
      %v267 = vlaneseq
      %v268 = vshrl.u32 %v267, 7
      %v269 = vsub.s32 0, %v268
      %v270 = vrot.slane %v265, %v269
      %v304 = vunpack.c.l.b16 %v229
      %v305 = vunpack.c.l.b16 %v230
      %v306 = vunpack.c.l.b16 %v231
      %v307 = vunpack.c.l.b16 %v232
      %v308 = vunpack.c.l.b16 %v233
      %v309 = vunpack.c.l.b16 %v234
      %v310 = vunpack.c.l.b16 %v235
      %v311 = vunpack.c.l.b16 %v236
      %v312 = vunpack.c.l.b16 %v237
      %v313 = vunpack.c.l.b16 %v238
      %v314 = vunpack.c.l.b16 %v239
      %v315 = vunpack.c.l.b16 %v240
      %v316 = vunpack.c.l.b16 %v241
      %v317 = vunpack.c.l.b16 %v242
      %v318 = vunpack.c.l.b16 %v243
      %v319 = vunpack.c.l.b16 %v244
      %v320 = vunpack.c.l.b16 %v245
      %v321 = vunpack.c.l.b16 %v246
      %v322 = vunpack.c.l.b16 %v247
      %v323 = vunpack.c.l.b16 %v248
      %v324 = vunpack.c.l.b16 %v249
      %v325 = vunpack.c.l.b16 %v250
      %v326 = vunpack.c.l.b16 %v251
      %v327 = vunpack.c.l.b16 %v252
      %v328 = vunpack.c.l.b16 %v253
      %v329 = vunpack.c.l.b16 %v254
      %v330 = vunpack.c.l.b16 %v255
      %v331 = vunpack.c.l.b16 %v256
      %v332 = vunpack.c.l.b16 %v257
      %v333 = vunpack.c.l.b16 %v258
      %v334 = vunpack.c.l.b16 %v259
      %v335 = vunpack.c.l.b16 %v260
      %v336 = vpack.c.b16 %v305, %v304
      %v337 = vpack.c.b16 %v307, %v306
      %v338 = vpack.c.b16 %v309, %v308
      %v339 = vpack.c.b16 %v311, %v310
      %v340 = vpack.c.b16 %v313, %v312
      %v341 = vpack.c.b16 %v315, %v314
      %v342 = vpack.c.b16 %v317, %v316
      %v343 = vpack.c.b16 %v319, %v318
      %v344 = vpack.c.b16 %v321, %v320
      %v345 = vpack.c.b16 %v323, %v322
      %v346 = vpack.c.b16 %v325, %v324
      %v347 = vpack.c.b16 %v327, %v326
      %v348 = vpack.c.b16 %v329, %v328
      %v349 = vpack.c.b16 %v331, %v330
      %v350 = vpack.c.b16 %v333, %v332
      %v351 = vpack.c.b16 %v335, %v334
      %v356 = vunpack.c.l.b16 %v261
      %v357 = vunpack.c.l.b16 %v262
      %v358 = vunpack.c.l.b16 %v263
      %v359 = vunpack.c.l.b16 %v264
      %v360 = vpack.c.b16 %v357, %v356
      %v361 = vpack.c.b16 %v359, %v358
      %vm364 = vcmask 261120
      %v366 = vsel %vm364, %v336, 0
      %v369 = vsel %vm364, %v337, 0
      %v372 = vsel %vm364, %v338, 0
      %v375 = vsel %vm364, %v339, 0
      %v378 = vsel %vm364, %v340, 0
      %v381 = vsel %vm364, %v341, 0
      %v384 = vsel %vm364, %v342, 0
      %v387 = vsel %vm364, %v343, 0
      %v390 = vsel %vm364, %v344, 0
      %v393 = vsel %vm364, %v345, 0
      %v396 = vsel %vm364, %v346, 0
      %v399 = vsel %vm364, %v347, 0
      %v402 = vsel %vm364, %v348, 0
      %v405 = vsel %vm364, %v349, 0
      %v408 = vsel %vm364, %v350, 0
      %v411 = vsel %vm364, %v351, 0
      %413 = vmatprep.subr.bf16.mxu0 0
      %414 = vmatpush1.bf16.msra.mxu0 %v360
      %415 = vmatprep.subr.bf16.mxu0 0
      %416 = vmatpush1.bf16.msra.mxu0 %v361
      %417 = vmatprep.subr.bf16.mxu0 0
      %418 = vmatpush1.bf16.msra.mxu0 0
      %419 = vmatprep.subr.bf16.mxu0 0
      %420 = vmatpush1.bf16.msra.mxu0 0
      %421 = vmatprep.subr.bf16.mxu0 0
      %422 = vmatpush1.bf16.msra.mxu0 0
      %423 = vmatprep.subr.bf16.mxu0 0
      %424 = vmatpush1.bf16.msra.mxu0 0
      %425 = vmatprep.subr.bf16.mxu0 0
      %426 = vmatpush1.bf16.msra.mxu0 0
      %427 = vmatprep.subr.bf16.mxu0 0
      %428 = vmatpush1.bf16.msra.mxu0 0
      %429 = vmatprep.subr.bf16.mxu0 0
      %430 = vmatpush1.bf16.msra.mxu0 0
      %431 = vmatprep.subr.bf16.mxu0 0
      %432 = vmatpush1.bf16.msra.mxu0 0
      %433 = vmatprep.subr.bf16.mxu0 0
      %434 = vmatpush1.bf16.msra.mxu0 0
      %435 = vmatprep.subr.bf16.mxu0 0
      %436 = vmatpush1.bf16.msra.mxu0 0
      %437 = vmatprep.subr.bf16.mxu0 0
      %438 = vmatpush1.bf16.msra.mxu0 0
      %439 = vmatprep.subr.bf16.mxu0 0
      %440 = vmatpush1.bf16.msra.mxu0 0
      %441 = vmatprep.subr.bf16.mxu0 0
      %442 = vmatpush1.bf16.msra.mxu0 0
      %443 = vmatprep.subr.bf16.mxu0 0
      %444 = vmatpush1.bf16.msra.mxu0 0
      %445 = vmatprep.mubr.bf16.mxu0 0
      %446 = vmatmul.mubr.bf16.gmra.mrb[0].mxu0 %v366
      %v447 = vpop.f32.mrb[0].mxu0
      %v448 = vadd.f32 %v270, %v447
      %v449 = vpop.f32.mrb[0].mxu0
      %v450 = vpop.f32.mrb[0].mxu0
      %v451 = vadd.f32 %v270, %v450
      %v452 = vpop.f32.mrb[0].mxu0
      %453 = vmatprep.mubr.bf16.mxu0 0
      %454 = vmatmul.mubr.bf16.gmra.mrb[0].mxu0 %v369
      %v455 = vpop.f32.mrb[0].mxu0
      %v456 = vadd.f32 %v270, %v455
      %v457 = vpop.f32.mrb[0].mxu0
      %v458 = vpop.f32.mrb[0].mxu0
      %v459 = vadd.f32 %v270, %v458
      %v460 = vpop.f32.mrb[0].mxu0
      %461 = vmatprep.mubr.bf16.mxu0 0
      %462 = vmatmul.mubr.bf16.gmra.mrb[0].mxu0 %v372
      %v463 = vpop.f32.mrb[0].mxu0
      %v464 = vadd.f32 %v270, %v463
      %v465 = vpop.f32.mrb[0].mxu0
      %v466 = vpop.f32.mrb[0].mxu0
      %v467 = vadd.f32 %v270, %v466
      %v468 = vpop.f32.mrb[0].mxu0
      %469 = vmatprep.mubr.bf16.mxu0 0
      %470 = vmatmul.mubr.bf16.gmra.mrb[0].mxu0 %v375
      %v471 = vpop.f32.mrb[0].mxu0
      %v472 = vadd.f32 %v270, %v471
      %v473 = vpop.f32.mrb[0].mxu0
      %v474 = vpop.f32.mrb[0].mxu0
      %v475 = vadd.f32 %v270, %v474
      %v476 = vpop.f32.mrb[0].mxu0
      %477 = vmatprep.mubr.bf16.mxu0 0
      %478 = vmatmul.mubr.bf16.gmra.mrb[0].mxu0 %v378
      %v479 = vpop.f32.mrb[0].mxu0
      %v480 = vadd.f32 %v270, %v479
      %v481 = vpop.f32.mrb[0].mxu0
      %v482 = vpop.f32.mrb[0].mxu0
      %v483 = vadd.f32 %v270, %v482
      %v484 = vpop.f32.mrb[0].mxu0
      %485 = vmatprep.mubr.bf16.mxu0 0
      %486 = vmatmul.mubr.bf16.gmra.mrb[0].mxu0 %v381
      %v487 = vpop.f32.mrb[0].mxu0
      %v488 = vadd.f32 %v270, %v487
      %v489 = vpop.f32.mrb[0].mxu0
      %v490 = vpop.f32.mrb[0].mxu0
      %v491 = vadd.f32 %v270, %v490
      %v492 = vpop.f32.mrb[0].mxu0
      %493 = vmatprep.mubr.bf16.mxu0 0
      %494 = vmatmul.mubr.bf16.gmra.mrb[0].mxu0 %v384
      %v495 = vpop.f32.mrb[0].mxu0
      %v496 = vadd.f32 %v270, %v495
      %v497 = vpop.f32.mrb[0].mxu0
      %v498 = vpop.f32.mrb[0].mxu0
      %v499 = vadd.f32 %v270, %v498
      %v500 = vpop.f32.mrb[0].mxu0
      %501 = vmatprep.mubr.bf16.mxu0 0
      %502 = vmatmul.mubr.bf16.gmra.mrb[0].mxu0 %v387
      %v503 = vpop.f32.mrb[0].mxu0
      %v504 = vadd.f32 %v270, %v503
      %v505 = vpop.f32.mrb[0].mxu0
      %v506 = vpop.f32.mrb[0].mxu0
      %v507 = vadd.f32 %v270, %v506
      %v508 = vpop.f32.mrb[0].mxu0
      %509 = vmatprep.mubr.bf16.mxu0 0
      %510 = vmatmul.mubr.bf16.gmra.mrb[0].mxu0 %v390
      %v511 = vpop.f32.mrb[0].mxu0
      %v512 = vadd.f32 %v270, %v511
      %v513 = vpop.f32.mrb[0].mxu0
      %v514 = vpop.f32.mrb[0].mxu0
      %v515 = vadd.f32 %v270, %v514
      %v516 = vpop.f32.mrb[0].mxu0
      %517 = vmatprep.mubr.bf16.mxu0 0
      %518 = vmatmul.mubr.bf16.gmra.mrb[0].mxu0 %v393
      %v519 = vpop.f32.mrb[0].mxu0
      %v520 = vadd.f32 %v270, %v519
      %v521 = vpop.f32.mrb[0].mxu0
      %v522 = vpop.f32.mrb[0].mxu0
      %v523 = vadd.f32 %v270, %v522
      %v524 = vpop.f32.mrb[0].mxu0
      %525 = vmatprep.mubr.bf16.mxu0 0
      %526 = vmatmul.mubr.bf16.gmra.mrb[0].mxu0 %v396
      %v527 = vpop.f32.mrb[0].mxu0
      %v528 = vadd.f32 %v270, %v527
      %v529 = vpop.f32.mrb[0].mxu0
      %v530 = vpop.f32.mrb[0].mxu0
      %v531 = vadd.f32 %v270, %v530
      %v532 = vpop.f32.mrb[0].mxu0
      %533 = vmatprep.mubr.bf16.mxu0 0
      %534 = vmatmul.mubr.bf16.gmra.mrb[0].mxu0 %v399
      %v535 = vpop.f32.mrb[0].mxu0
      %v536 = vadd.f32 %v270, %v535
      %v537 = vpop.f32.mrb[0].mxu0
      %v538 = vpop.f32.mrb[0].mxu0
      %v539 = vadd.f32 %v270, %v538
      %v540 = vpop.f32.mrb[0].mxu0
      %541 = vmatprep.mubr.bf16.mxu0 0
      %542 = vmatmul.mubr.bf16.gmra.mrb[0].mxu0 %v402
      %v543 = vpop.f32.mrb[0].mxu0
      %v544 = vadd.f32 %v270, %v543
      %v545 = vpop.f32.mrb[0].mxu0
      %v546 = vpop.f32.mrb[0].mxu0
      %v547 = vadd.f32 %v270, %v546
      %v548 = vpop.f32.mrb[0].mxu0
      %549 = vmatprep.mubr.bf16.mxu0 0
      %550 = vmatmul.mubr.bf16.gmra.mrb[0].mxu0 %v405
      %v551 = vpop.f32.mrb[0].mxu0
      %v552 = vadd.f32 %v270, %v551
      %v553 = vpop.f32.mrb[0].mxu0
      %v554 = vpop.f32.mrb[0].mxu0
      %v555 = vadd.f32 %v270, %v554
      %v556 = vpop.f32.mrb[0].mxu0
      %557 = vmatprep.mubr.bf16.mxu0 0
      %558 = vmatmul.mubr.bf16.gmra.mrb[0].mxu0 %v408
      %v559 = vpop.f32.mrb[0].mxu0
      %v560 = vadd.f32 %v270, %v559
      %v561 = vpop.f32.mrb[0].mxu0
      %v562 = vpop.f32.mrb[0].mxu0
      %v563 = vadd.f32 %v270, %v562
      %v564 = vpop.f32.mrb[0].mxu0
      %565 = vmatprep.mubr.bf16.mxu0 0
      %566 = vmatmul.mubr.bf16.gmra.mrb[0].mxu0 %v411
      %v567 = vpop.f32.mrb[0].mxu0
      %v568 = vadd.f32 %v270, %v567
      %v569 = vpop.f32.mrb[0].mxu0
      %v570 = vpop.f32.mrb[0].mxu0
      %v571 = vadd.f32 %v270, %v570
      %v572 = vpop.f32.mrb[0].mxu0
      %573 = vdwg.mxu0
      %v574 = vtanh.pop %v448
      %v575 = vtanh.pop %v451
      %v576 = vtanh.pop %v456
      %v577 = vtanh.pop %v459
      %v578 = vtanh.pop %v464
      %v579 = vtanh.pop %v467
      %v580 = vtanh.pop %v472
      %v581 = vtanh.pop %v475
      %v582 = vtanh.pop %v480
      %v583 = vtanh.pop %v483
      %v584 = vtanh.pop %v488
      %v585 = vtanh.pop %v491
      %v586 = vtanh.pop %v496
      %v587 = vtanh.pop %v499
      %v588 = vtanh.pop %v504
      %v589 = vtanh.pop %v507
      %v590 = vtanh.pop %v512
      %v591 = vtanh.pop %v515
      %v592 = vtanh.pop %v520
      %v593 = vtanh.pop %v523
      %v594 = vtanh.pop %v528
      %v595 = vtanh.pop %v531
      %v596 = vtanh.pop %v536
      %v597 = vtanh.pop %v539
      %v598 = vtanh.pop %v544
      %v599 = vtanh.pop %v547
      %v600 = vtanh.pop %v552
      %v601 = vtanh.pop %v555
      %v602 = vtanh.pop %v560
      %v603 = vtanh.pop %v563
      %v604 = vtanh.pop %v568
      %v605 = vtanh.pop %v571
      %v606 = vpack.c.bf16 %v575, %v574
      %v607 = vpack.c.bf16 %v577, %v576
      %v608 = vpack.c.bf16 %v579, %v578
      %v609 = vpack.c.bf16 %v581, %v580
      %v610 = vpack.c.bf16 %v583, %v582
      %v611 = vpack.c.bf16 %v585, %v584
      %v612 = vpack.c.bf16 %v587, %v586
      %v613 = vpack.c.bf16 %v589, %v588
      %v614 = vpack.c.bf16 %v591, %v590
      %v615 = vpack.c.bf16 %v593, %v592
      %v616 = vpack.c.bf16 %v595, %v594
      %v617 = vpack.c.bf16 %v597, %v596
      %v618 = vpack.c.bf16 %v599, %v598
      %v619 = vpack.c.bf16 %v601, %v600
      %v620 = vpack.c.bf16 %v603, %v602
      %v621 = vpack.c.bf16 %v605, %v604
      %v622 = vld [vmem:[%s3] sm:$0xf]
      %v623 = vld [vmem:[%s3 + $0x4] sm:$0xf]
      %v624 = vld [vmem:[%s3 + $0x8] sm:$0xf]
      %v625 = vld [vmem:[%s3 + $0xc] sm:$0xf]
      %v626 = vld [vmem:[%s3 + $0x10] sm:$0xf]
      %v627 = vld [vmem:[%s3 + $0x14] sm:$0xf]
      %v628 = vld [vmem:[%s3 + $0x18] sm:$0xf]
      %v629 = vld [vmem:[%s3 + $0x1c] sm:$0xf]
      %v630 = vld [vmem:[%s3 + $0x20] sm:$0xf]
      %v631 = vld [vmem:[%s3 + $0x24] sm:$0xf]
      %v632 = vld [vmem:[%s3 + $0x28] sm:$0xf]
      %v633 = vld [vmem:[%s3 + $0x2c] sm:$0xf]
      %v634 = vld [vmem:[%s3 + $0x30] sm:$0xf]
      %v635 = vld [vmem:[%s3 + $0x34] sm:$0xf]
      %v636 = vld [vmem:[%s3 + $0x38] sm:$0xf]
      %v637 = vld [vmem:[%s3 + $0x3c] sm:$0xf]
      %v638 = vld [vmem:[%s4] sm:$0x1]
      %v640 = vlaneseq
      %v641 = vshrl.u32 %v640, 7
      %v642 = vsub.s32 0, %v641
      %v643 = vrot.slane %v638, %v642
      %v661 = vunpack.c.l.b16 %v622
      %v662 = vunpack.c.l.b16 %v623
      %v663 = vunpack.c.l.b16 %v624
      %v664 = vunpack.c.l.b16 %v625
      %v665 = vunpack.c.l.b16 %v626
      %v666 = vunpack.c.l.b16 %v627
      %v667 = vunpack.c.l.b16 %v628
      %v668 = vunpack.c.l.b16 %v629
      %v669 = vunpack.c.l.b16 %v630
      %v670 = vunpack.c.l.b16 %v631
      %v671 = vunpack.c.l.b16 %v632
      %v672 = vunpack.c.l.b16 %v633
      %v673 = vunpack.c.l.b16 %v634
      %v674 = vunpack.c.l.b16 %v635
      %v675 = vunpack.c.l.b16 %v636
      %v676 = vunpack.c.l.b16 %v637
      %v677 = vpack.c.b16 %v662, %v661
      %v678 = vpack.c.b16 %v664, %v663
      %v679 = vpack.c.b16 %v666, %v665
      %v680 = vpack.c.b16 %v668, %v667
      %v681 = vpack.c.b16 %v670, %v669
      %v682 = vpack.c.b16 %v672, %v671
      %v683 = vpack.c.b16 %v674, %v673
      %v684 = vpack.c.b16 %v676, %v675
      %693 = vmatprep.subr.bf16.mxu0 0
      %694 = vmatpush1.bf16.msra.mxu0 %v677
      %695 = vmatprep.subr.bf16.mxu0 0
      %696 = vmatpush1.bf16.msra.mxu0 %v678
      %697 = vmatprep.subr.bf16.mxu0 0
      %698 = vmatpush1.bf16.msra.mxu0 %v679
      %699 = vmatprep.subr.bf16.mxu0 0
      %700 = vmatpush1.bf16.msra.mxu0 %v680
      %701 = vmatprep.subr.bf16.mxu0 0
      %702 = vmatpush1.bf16.msra.mxu0 %v681
      %703 = vmatprep.subr.bf16.mxu0 0
      %704 = vmatpush1.bf16.msra.mxu0 %v682
      %705 = vmatprep.subr.bf16.mxu0 0
      %706 = vmatpush1.bf16.msra.mxu0 %v683
      %707 = vmatprep.subr.bf16.mxu0 0
      %708 = vmatpush1.bf16.msra.mxu0 %v684
      %709 = vmatprep.subr.bf16.mxu0 0
      %710 = vmatpush1.bf16.msra.mxu0 0
      %711 = vmatprep.subr.bf16.mxu0 0
      %712 = vmatpush1.bf16.msra.mxu0 0
      %713 = vmatprep.subr.bf16.mxu0 0
      %714 = vmatpush1.bf16.msra.mxu0 0
      %715 = vmatprep.subr.bf16.mxu0 0
      %716 = vmatpush1.bf16.msra.mxu0 0
      %717 = vmatprep.subr.bf16.mxu0 0
      %718 = vmatpush1.bf16.msra.mxu0 0
      %719 = vmatprep.subr.bf16.mxu0 0
      %720 = vmatpush1.bf16.msra.mxu0 0
      %721 = vmatprep.subr.bf16.mxu0 0
      %722 = vmatpush1.bf16.msra.mxu0 0
      %723 = vmatprep.subr.bf16.mxu0 0
      %724 = vmatpush1.bf16.msra.mxu0 0
      %725 = vmatprep.mubr.bf16.mxu0 0
      %726 = vmatmul.mubr.bf16.gmra.mrb[0].mxu0 %v606
      %v727 = vpop.f32.mrb[0].mxu0
      %v728 = vadd.f32 %v643, %v727
      %v729 = vpop.f32.mrb[0].mxu0
      %v730 = vpop.f32.mrb[0].mxu0
      %v731 = vadd.f32 %v643, %v730
      %v732 = vpop.f32.mrb[0].mxu0
      %733 = vmatprep.mubr.bf16.mxu0 0
      %734 = vmatmul.mubr.bf16.gmra.mrb[0].mxu0 %v607
      %v735 = vpop.f32.mrb[0].mxu0
      %v736 = vadd.f32 %v643, %v735
      %v737 = vpop.f32.mrb[0].mxu0
      %v738 = vpop.f32.mrb[0].mxu0
      %v739 = vadd.f32 %v643, %v738
      %v740 = vpop.f32.mrb[0].mxu0
      %741 = vmatprep.mubr.bf16.mxu0 0
      %742 = vmatmul.mubr.bf16.gmra.mrb[0].mxu0 %v608
      %v743 = vpop.f32.mrb[0].mxu0
      %v744 = vadd.f32 %v643, %v743
      %v745 = vpop.f32.mrb[0].mxu0
      %v746 = vpop.f32.mrb[0].mxu0
      %v747 = vadd.f32 %v643, %v746
      %v748 = vpop.f32.mrb[0].mxu0
      %749 = vmatprep.mubr.bf16.mxu0 0
      %750 = vmatmul.mubr.bf16.gmra.mrb[0].mxu0 %v609
      %v751 = vpop.f32.mrb[0].mxu0
      %v752 = vadd.f32 %v643, %v751
      %v753 = vpop.f32.mrb[0].mxu0
      %v754 = vpop.f32.mrb[0].mxu0
      %v755 = vadd.f32 %v643, %v754
      %v756 = vpop.f32.mrb[0].mxu0
      %757 = vmatprep.mubr.bf16.mxu0 0
      %758 = vmatmul.mubr.bf16.gmra.mrb[0].mxu0 %v610
      %v759 = vpop.f32.mrb[0].mxu0
      %v760 = vadd.f32 %v643, %v759
      %v761 = vpop.f32.mrb[0].mxu0
      %v762 = vpop.f32.mrb[0].mxu0
      %v763 = vadd.f32 %v643, %v762
      %v764 = vpop.f32.mrb[0].mxu0
      %765 = vmatprep.mubr.bf16.mxu0 0
      %766 = vmatmul.mubr.bf16.gmra.mrb[0].mxu0 %v611
      %v767 = vpop.f32.mrb[0].mxu0
      %v768 = vadd.f32 %v643, %v767
      %v769 = vpop.f32.mrb[0].mxu0
      %v770 = vpop.f32.mrb[0].mxu0
      %v771 = vadd.f32 %v643, %v770
      %v772 = vpop.f32.mrb[0].mxu0
      %773 = vmatprep.mubr.bf16.mxu0 0
      %774 = vmatmul.mubr.bf16.gmra.mrb[0].mxu0 %v612
      %v775 = vpop.f32.mrb[0].mxu0
      %v776 = vadd.f32 %v643, %v775
      %v777 = vpop.f32.mrb[0].mxu0
      %v778 = vpop.f32.mrb[0].mxu0
      %v779 = vadd.f32 %v643, %v778
      %v780 = vpop.f32.mrb[0].mxu0
      %781 = vmatprep.mubr.bf16.mxu0 0
      %782 = vmatmul.mubr.bf16.gmra.mrb[0].mxu0 %v613
      %v783 = vpop.f32.mrb[0].mxu0
      %v784 = vadd.f32 %v643, %v783
      %v785 = vpop.f32.mrb[0].mxu0
      %v786 = vpop.f32.mrb[0].mxu0
      %v787 = vadd.f32 %v643, %v786
      %v788 = vpop.f32.mrb[0].mxu0
      %789 = vmatprep.mubr.bf16.mxu0 0
      %790 = vmatmul.mubr.bf16.gmra.mrb[0].mxu0 %v614
      %v791 = vpop.f32.mrb[0].mxu0
      %v792 = vadd.f32 %v643, %v791
      %v793 = vpop.f32.mrb[0].mxu0
      %v794 = vpop.f32.mrb[0].mxu0
      %v795 = vadd.f32 %v643, %v794
      %v796 = vpop.f32.mrb[0].mxu0
      %797 = vmatprep.mubr.bf16.mxu0 0
      %798 = vmatmul.mubr.bf16.gmra.mrb[0].mxu0 %v615
      %v799 = vpop.f32.mrb[0].mxu0
      %v800 = vadd.f32 %v643, %v799
      %v801 = vpop.f32.mrb[0].mxu0
      %v802 = vpop.f32.mrb[0].mxu0
      %v803 = vadd.f32 %v643, %v802
      %v804 = vpop.f32.mrb[0].mxu0
      %805 = vmatprep.mubr.bf16.mxu0 0
      %806 = vmatmul.mubr.bf16.gmra.mrb[0].mxu0 %v616
      %v807 = vpop.f32.mrb[0].mxu0
      %v808 = vadd.f32 %v643, %v807
      %v809 = vpop.f32.mrb[0].mxu0
      %v810 = vpop.f32.mrb[0].mxu0
      %v811 = vadd.f32 %v643, %v810
      %v812 = vpop.f32.mrb[0].mxu0
      %813 = vmatprep.mubr.bf16.mxu0 0
      %814 = vmatmul.mubr.bf16.gmra.mrb[0].mxu0 %v617
      %v815 = vpop.f32.mrb[0].mxu0
      %v816 = vadd.f32 %v643, %v815
      %v817 = vpop.f32.mrb[0].mxu0
      %v818 = vpop.f32.mrb[0].mxu0
      %v819 = vadd.f32 %v643, %v818
      %v820 = vpop.f32.mrb[0].mxu0
      %821 = vmatprep.mubr.bf16.mxu0 0
      %822 = vmatmul.mubr.bf16.gmra.mrb[0].mxu0 %v618
      %v823 = vpop.f32.mrb[0].mxu0
      %v824 = vadd.f32 %v643, %v823
      %v825 = vpop.f32.mrb[0].mxu0
      %v826 = vpop.f32.mrb[0].mxu0
      %v827 = vadd.f32 %v643, %v826
      %v828 = vpop.f32.mrb[0].mxu0
      %829 = vmatprep.mubr.bf16.mxu0 0
      %830 = vmatmul.mubr.bf16.gmra.mrb[0].mxu0 %v619
      %v831 = vpop.f32.mrb[0].mxu0
      %v832 = vadd.f32 %v643, %v831
      %v833 = vpop.f32.mrb[0].mxu0
      %v834 = vpop.f32.mrb[0].mxu0
      %v835 = vadd.f32 %v643, %v834
      %v836 = vpop.f32.mrb[0].mxu0
      %837 = vmatprep.mubr.bf16.mxu0 0
      %838 = vmatmul.mubr.bf16.gmra.mrb[0].mxu0 %v620
      %v839 = vpop.f32.mrb[0].mxu0
      %v840 = vadd.f32 %v643, %v839
      %v841 = vpop.f32.mrb[0].mxu0
      %v842 = vpop.f32.mrb[0].mxu0
      %v843 = vadd.f32 %v643, %v842
      %v844 = vpop.f32.mrb[0].mxu0
      %845 = vmatprep.mubr.bf16.mxu0 0
      %846 = vmatmul.mubr.bf16.gmra.mrb[0].mxu0 %v621
      %v847 = vpop.f32.mrb[0].mxu0
      %v848 = vadd.f32 %v643, %v847
      %v849 = vpop.f32.mrb[0].mxu0
      %v850 = vpop.f32.mrb[0].mxu0
      %v851 = vadd.f32 %v643, %v850
      %v852 = vpop.f32.mrb[0].mxu0
      %853 = vdwg.mxu0
      %854 = vmax.xlane.f32.xlu0 %v728
      %v855 = vpop.xlane.xlu0 %854
      %856 = vmax.xlane.f32.xlu0 %v731
      %v857 = vpop.xlane.xlu0 %856
      %858 = vmax.xlane.f32.xlu0 %v736
      %v859 = vpop.xlane.xlu0 %858
      %860 = vmax.xlane.f32.xlu0 %v739
      %v861 = vpop.xlane.xlu0 %860
      %862 = vmax.xlane.f32.xlu0 %v744
      %v863 = vpop.xlane.xlu0 %862
      %864 = vmax.xlane.f32.xlu0 %v747
      %v865 = vpop.xlane.xlu0 %864
      %866 = vmax.xlane.f32.xlu0 %v752
      %v867 = vpop.xlane.xlu0 %866
      %868 = vmax.xlane.f32.xlu0 %v755
      %v869 = vpop.xlane.xlu0 %868
      %870 = vmax.xlane.f32.xlu0 %v760
      %v871 = vpop.xlane.xlu0 %870
      %872 = vmax.xlane.f32.xlu0 %v763
      %v873 = vpop.xlane.xlu0 %872
      %874 = vmax.xlane.f32.xlu0 %v768
      %v875 = vpop.xlane.xlu0 %874
      %876 = vmax.xlane.f32.xlu0 %v771
      %v877 = vpop.xlane.xlu0 %876
      %878 = vmax.xlane.f32.xlu0 %v776
      %v879 = vpop.xlane.xlu0 %878
      %880 = vmax.xlane.f32.xlu0 %v779
      %v881 = vpop.xlane.xlu0 %880
      %882 = vmax.xlane.f32.xlu0 %v784
      %v883 = vpop.xlane.xlu0 %882
      %884 = vmax.xlane.f32.xlu0 %v787
      %v885 = vpop.xlane.xlu0 %884
      %886 = vmax.xlane.f32.xlu0 %v792
      %v887 = vpop.xlane.xlu0 %886
      %888 = vmax.xlane.f32.xlu0 %v795
      %v889 = vpop.xlane.xlu0 %888
      %890 = vmax.xlane.f32.xlu0 %v800
      %v891 = vpop.xlane.xlu0 %890
      %892 = vmax.xlane.f32.xlu0 %v803
      %v893 = vpop.xlane.xlu0 %892
      %894 = vmax.xlane.f32.xlu0 %v808
      %v895 = vpop.xlane.xlu0 %894
      %896 = vmax.xlane.f32.xlu0 %v811
      %v897 = vpop.xlane.xlu0 %896
      %898 = vmax.xlane.f32.xlu0 %v816
      %v899 = vpop.xlane.xlu0 %898
      %900 = vmax.xlane.f32.xlu0 %v819
      %v901 = vpop.xlane.xlu0 %900
      %902 = vmax.xlane.f32.xlu0 %v824
      %v903 = vpop.xlane.xlu0 %902
      %904 = vmax.xlane.f32.xlu0 %v827
      %v905 = vpop.xlane.xlu0 %904
      %906 = vmax.xlane.f32.xlu0 %v832
      %v907 = vpop.xlane.xlu0 %906
      %908 = vmax.xlane.f32.xlu0 %v835
      %v909 = vpop.xlane.xlu0 %908
      %910 = vmax.xlane.f32.xlu0 %v840
      %v911 = vpop.xlane.xlu0 %910
      %912 = vmax.xlane.f32.xlu0 %v843
      %v913 = vpop.xlane.xlu0 %912
      %914 = vmax.xlane.f32.xlu0 %v848
      %v915 = vpop.xlane.xlu0 %914
      %916 = vmax.xlane.f32.xlu0 %v851
      %v917 = vpop.xlane.xlu0 %916
      %v918 = vsub.f32 %v728, %v855
      %v919 = vsub.f32 %v731, %v857
      %v920 = vsub.f32 %v736, %v859
      %v921 = vsub.f32 %v739, %v861
      %v922 = vsub.f32 %v744, %v863
      %v923 = vsub.f32 %v747, %v865
      %v924 = vsub.f32 %v752, %v867
      %v925 = vsub.f32 %v755, %v869
      %v926 = vsub.f32 %v760, %v871
      %v927 = vsub.f32 %v763, %v873
      %v928 = vsub.f32 %v768, %v875
      %v929 = vsub.f32 %v771, %v877
      %v930 = vsub.f32 %v776, %v879
      %v931 = vsub.f32 %v779, %v881
      %v932 = vsub.f32 %v784, %v883
      %v933 = vsub.f32 %v787, %v885
      %v934 = vsub.f32 %v792, %v887
      %v935 = vsub.f32 %v795, %v889
      %v936 = vsub.f32 %v800, %v891
      %v937 = vsub.f32 %v803, %v893
      %v938 = vsub.f32 %v808, %v895
      %v939 = vsub.f32 %v811, %v897
      %v940 = vsub.f32 %v816, %v899
      %v941 = vsub.f32 %v819, %v901
      %v942 = vsub.f32 %v824, %v903
      %v943 = vsub.f32 %v827, %v905
      %v944 = vsub.f32 %v832, %v907
      %v945 = vsub.f32 %v835, %v909
      %v946 = vsub.f32 %v840, %v911
      %v947 = vsub.f32 %v843, %v913
      %v948 = vsub.f32 %v848, %v915
      %v949 = vsub.f32 %v851, %v917
      %v950 = vmul.f32 %v918, 1.442695
      %v951 = vpow.pop %v950
      %v952 = vmul.f32 %v919, 1.442695
      %v953 = vpow.pop %v952
      %v954 = vmul.f32 %v920, 1.442695
      %v955 = vpow.pop %v954
      %v956 = vmul.f32 %v921, 1.442695
      %v957 = vpow.pop %v956
      %v958 = vmul.f32 %v922, 1.442695
      %v959 = vpow.pop %v958
      %v960 = vmul.f32 %v923, 1.442695
      %v961 = vpow.pop %v960
      %v962 = vmul.f32 %v924, 1.442695
      %v963 = vpow.pop %v962
      %v964 = vmul.f32 %v925, 1.442695
      %v965 = vpow.pop %v964
      %v966 = vmul.f32 %v926, 1.442695
      %v967 = vpow.pop %v966
      %v968 = vmul.f32 %v927, 1.442695
      %v969 = vpow.pop %v968
      %v970 = vmul.f32 %v928, 1.442695
      %v971 = vpow.pop %v970
      %v972 = vmul.f32 %v929, 1.442695
      %v973 = vpow.pop %v972
      %v974 = vmul.f32 %v930, 1.442695
      %v975 = vpow.pop %v974
      %v976 = vmul.f32 %v931, 1.442695
      %v977 = vpow.pop %v976
      %v978 = vmul.f32 %v932, 1.442695
      %v979 = vpow.pop %v978
      %v980 = vmul.f32 %v933, 1.442695
      %v981 = vpow.pop %v980
      %v982 = vmul.f32 %v934, 1.442695
      %v983 = vpow.pop %v982
      %v984 = vmul.f32 %v935, 1.442695
      %v985 = vpow.pop %v984
      %v986 = vmul.f32 %v936, 1.442695
      %v987 = vpow.pop %v986
      %v988 = vmul.f32 %v937, 1.442695
      %v989 = vpow.pop %v988
      %v990 = vmul.f32 %v938, 1.442695
      %v991 = vpow.pop %v990
      %v992 = vmul.f32 %v939, 1.442695
      %v993 = vpow.pop %v992
      %v994 = vmul.f32 %v940, 1.442695
      %v995 = vpow.pop %v994
      %v996 = vmul.f32 %v941, 1.442695
      %v997 = vpow.pop %v996
      %v998 = vmul.f32 %v942, 1.442695
      %v999 = vpow.pop %v998
      %v1000 = vmul.f32 %v943, 1.442695
      %v1001 = vpow.pop %v1000
      %v1002 = vmul.f32 %v944, 1.442695
      %v1003 = vpow.pop %v1002
      %v1004 = vmul.f32 %v945, 1.442695
      %v1005 = vpow.pop %v1004
      %v1006 = vmul.f32 %v946, 1.442695
      %v1007 = vpow.pop %v1006
      %v1008 = vmul.f32 %v947, 1.442695
      %v1009 = vpow.pop %v1008
      %v1010 = vmul.f32 %v948, 1.442695
      %v1011 = vpow.pop %v1010
      %v1012 = vmul.f32 %v949, 1.442695
      %v1013 = vpow.pop %v1012
      %1014 = vadd.xlane.f32.xlu0 %v951
      %v1015 = vpop.xlane.xlu0 %1014
      %1016 = vadd.xlane.f32.xlu0 %v953
      %v1017 = vpop.xlane.xlu0 %1016
      %1018 = vadd.xlane.f32.xlu0 %v955
      %v1019 = vpop.xlane.xlu0 %1018
      %1020 = vadd.xlane.f32.xlu0 %v957
      %v1021 = vpop.xlane.xlu0 %1020
      %1022 = vadd.xlane.f32.xlu0 %v959
      %v1023 = vpop.xlane.xlu0 %1022
      %1024 = vadd.xlane.f32.xlu0 %v961
      %v1025 = vpop.xlane.xlu0 %1024
      %1026 = vadd.xlane.f32.xlu0 %v963
      %v1027 = vpop.xlane.xlu0 %1026
      %1028 = vadd.xlane.f32.xlu0 %v965
      %v1029 = vpop.xlane.xlu0 %1028
      %1030 = vadd.xlane.f32.xlu0 %v967
      %v1031 = vpop.xlane.xlu0 %1030
      %1032 = vadd.xlane.f32.xlu0 %v969
      %v1033 = vpop.xlane.xlu0 %1032
      %1034 = vadd.xlane.f32.xlu0 %v971
      %v1035 = vpop.xlane.xlu0 %1034
      %1036 = vadd.xlane.f32.xlu0 %v973
      %v1037 = vpop.xlane.xlu0 %1036
      %1038 = vadd.xlane.f32.xlu0 %v975
      %v1039 = vpop.xlane.xlu0 %1038
      %1040 = vadd.xlane.f32.xlu0 %v977
      %v1041 = vpop.xlane.xlu0 %1040
      %1042 = vadd.xlane.f32.xlu0 %v979
      %v1043 = vpop.xlane.xlu0 %1042
      %1044 = vadd.xlane.f32.xlu0 %v981
      %v1045 = vpop.xlane.xlu0 %1044
      %1046 = vadd.xlane.f32.xlu0 %v983
      %v1047 = vpop.xlane.xlu0 %1046
      %1048 = vadd.xlane.f32.xlu0 %v985
      %v1049 = vpop.xlane.xlu0 %1048
      %1050 = vadd.xlane.f32.xlu0 %v987
      %v1051 = vpop.xlane.xlu0 %1050
      %1052 = vadd.xlane.f32.xlu0 %v989
      %v1053 = vpop.xlane.xlu0 %1052
      %1054 = vadd.xlane.f32.xlu0 %v991
      %v1055 = vpop.xlane.xlu0 %1054
      %1056 = vadd.xlane.f32.xlu0 %v993
      %v1057 = vpop.xlane.xlu0 %1056
      %1058 = vadd.xlane.f32.xlu0 %v995
      %v1059 = vpop.xlane.xlu0 %1058
      %1060 = vadd.xlane.f32.xlu0 %v997
      %v1061 = vpop.xlane.xlu0 %1060
      %1062 = vadd.xlane.f32.xlu0 %v999
      %v1063 = vpop.xlane.xlu0 %1062
      %1064 = vadd.xlane.f32.xlu0 %v1001
      %v1065 = vpop.xlane.xlu0 %1064
      %1066 = vadd.xlane.f32.xlu0 %v1003
      %v1067 = vpop.xlane.xlu0 %1066
      %1068 = vadd.xlane.f32.xlu0 %v1005
      %v1069 = vpop.xlane.xlu0 %1068
      %1070 = vadd.xlane.f32.xlu0 %v1007
      %v1071 = vpop.xlane.xlu0 %1070
      %1072 = vadd.xlane.f32.xlu0 %v1009
      %v1073 = vpop.xlane.xlu0 %1072
      %1074 = vadd.xlane.f32.xlu0 %v1011
      %v1075 = vpop.xlane.xlu0 %1074
      %1076 = vadd.xlane.f32.xlu0 %v1013
      %v1077 = vpop.xlane.xlu0 %1076
      %v1078 = vrcp.pop %v1015
      %v1079 = vrcp.pop %v1017
      %v1080 = vrcp.pop %v1019
      %v1081 = vrcp.pop %v1021
      %v1082 = vrcp.pop %v1023
      %v1083 = vrcp.pop %v1025
      %v1084 = vrcp.pop %v1027
      %v1085 = vrcp.pop %v1029
      %v1086 = vrcp.pop %v1031
      %v1087 = vrcp.pop %v1033
      %v1088 = vrcp.pop %v1035
      %v1089 = vrcp.pop %v1037
      %v1090 = vrcp.pop %v1039
      %v1091 = vrcp.pop %v1041
      %v1092 = vrcp.pop %v1043
      %v1093 = vrcp.pop %v1045
      %v1094 = vrcp.pop %v1047
      %v1095 = vrcp.pop %v1049
      %v1096 = vrcp.pop %v1051
      %v1097 = vrcp.pop %v1053
      %v1098 = vrcp.pop %v1055
      %v1099 = vrcp.pop %v1057
      %v1100 = vrcp.pop %v1059
      %v1101 = vrcp.pop %v1061
      %v1102 = vrcp.pop %v1063
      %v1103 = vrcp.pop %v1065
      %v1104 = vrcp.pop %v1067
      %v1105 = vrcp.pop %v1069
      %v1106 = vrcp.pop %v1071
      %v1107 = vrcp.pop %v1073
      %v1108 = vrcp.pop %v1075
      %v1109 = vrcp.pop %v1077
      %v1110 = vmul.f32 %v1015, %v1078
      %v1111 = vmul.f32 %v1017, %v1079
      %v1112 = vmul.f32 %v1019, %v1080
      %v1113 = vmul.f32 %v1021, %v1081
      %v1114 = vmul.f32 %v1023, %v1082
      %v1115 = vmul.f32 %v1025, %v1083
      %v1116 = vmul.f32 %v1027, %v1084
      %v1117 = vmul.f32 %v1029, %v1085
      %v1118 = vmul.f32 %v1031, %v1086
      %v1119 = vmul.f32 %v1033, %v1087
      %v1120 = vmul.f32 %v1035, %v1088
      %v1121 = vmul.f32 %v1037, %v1089
      %v1122 = vmul.f32 %v1039, %v1090
      %v1123 = vmul.f32 %v1041, %v1091
      %v1124 = vmul.f32 %v1043, %v1092
      %v1125 = vmul.f32 %v1045, %v1093
      %v1126 = vmul.f32 %v1047, %v1094
      %v1127 = vmul.f32 %v1049, %v1095
      %v1128 = vmul.f32 %v1051, %v1096
      %v1129 = vmul.f32 %v1053, %v1097
      %v1130 = vmul.f32 %v1055, %v1098
      %v1131 = vmul.f32 %v1057, %v1099
      %v1132 = vmul.f32 %v1059, %v1100
      %v1133 = vmul.f32 %v1061, %v1101
      %v1134 = vmul.f32 %v1063, %v1102
      %v1135 = vmul.f32 %v1065, %v1103
      %v1136 = vmul.f32 %v1067, %v1104
      %v1137 = vmul.f32 %v1069, %v1105
      %v1138 = vmul.f32 %v1071, %v1106
      %v1139 = vmul.f32 %v1073, %v1107
      %v1140 = vmul.f32 %v1075, %v1108
      %v1141 = vmul.f32 %v1077, %v1109
      %v1142 = vsub.f32 2.0, %v1110
      %v1143 = vsub.f32 2.0, %v1111
      %v1144 = vsub.f32 2.0, %v1112
      %v1145 = vsub.f32 2.0, %v1113
      %v1146 = vsub.f32 2.0, %v1114
      %v1147 = vsub.f32 2.0, %v1115
      %v1148 = vsub.f32 2.0, %v1116
      %v1149 = vsub.f32 2.0, %v1117
      %v1150 = vsub.f32 2.0, %v1118
      %v1151 = vsub.f32 2.0, %v1119
      %v1152 = vsub.f32 2.0, %v1120
      %v1153 = vsub.f32 2.0, %v1121
      %v1154 = vsub.f32 2.0, %v1122
      %v1155 = vsub.f32 2.0, %v1123
      %v1156 = vsub.f32 2.0, %v1124
      %v1157 = vsub.f32 2.0, %v1125
      %v1158 = vsub.f32 2.0, %v1126
      %v1159 = vsub.f32 2.0, %v1127
      %v1160 = vsub.f32 2.0, %v1128
      %v1161 = vsub.f32 2.0, %v1129
      %v1162 = vsub.f32 2.0, %v1130
      %v1163 = vsub.f32 2.0, %v1131
      %v1164 = vsub.f32 2.0, %v1132
      %v1165 = vsub.f32 2.0, %v1133
      %v1166 = vsub.f32 2.0, %v1134
      %v1167 = vsub.f32 2.0, %v1135
      %v1168 = vsub.f32 2.0, %v1136
      %v1169 = vsub.f32 2.0, %v1137
      %v1170 = vsub.f32 2.0, %v1138
      %v1171 = vsub.f32 2.0, %v1139
      %v1172 = vsub.f32 2.0, %v1140
      %v1173 = vsub.f32 2.0, %v1141
      %v1174 = vmul.f32 %v1078, %v1142
      %v1175 = vmul.f32 %v1079, %v1143
      %v1176 = vmul.f32 %v1080, %v1144
      %v1177 = vmul.f32 %v1081, %v1145
      %v1178 = vmul.f32 %v1082, %v1146
      %v1179 = vmul.f32 %v1083, %v1147
      %v1180 = vmul.f32 %v1084, %v1148
      %v1181 = vmul.f32 %v1085, %v1149
      %v1182 = vmul.f32 %v1086, %v1150
      %v1183 = vmul.f32 %v1087, %v1151
      %v1184 = vmul.f32 %v1088, %v1152
      %v1185 = vmul.f32 %v1089, %v1153
      %v1186 = vmul.f32 %v1090, %v1154
      %v1187 = vmul.f32 %v1091, %v1155
      %v1188 = vmul.f32 %v1092, %v1156
      %v1189 = vmul.f32 %v1093, %v1157
      %v1190 = vmul.f32 %v1094, %v1158
      %v1191 = vmul.f32 %v1095, %v1159
      %v1192 = vmul.f32 %v1096, %v1160
      %v1193 = vmul.f32 %v1097, %v1161
      %v1194 = vmul.f32 %v1098, %v1162
      %v1195 = vmul.f32 %v1099, %v1163
      %v1196 = vmul.f32 %v1100, %v1164
      %v1197 = vmul.f32 %v1101, %v1165
      %v1198 = vmul.f32 %v1102, %v1166
      %v1199 = vmul.f32 %v1103, %v1167
      %v1200 = vmul.f32 %v1104, %v1168
      %v1201 = vmul.f32 %v1105, %v1169
      %v1202 = vmul.f32 %v1106, %v1170
      %v1203 = vmul.f32 %v1107, %v1171
      %v1204 = vmul.f32 %v1108, %v1172
      %v1205 = vmul.f32 %v1109, %v1173
      %v1206 = vmul.f32 %v951, %v1174
      %v1207 = vmul.f32 %v953, %v1175
      %v1208 = vmul.f32 %v955, %v1176
      %v1209 = vmul.f32 %v957, %v1177
      %v1210 = vmul.f32 %v959, %v1178
      %v1211 = vmul.f32 %v961, %v1179
      %v1212 = vmul.f32 %v963, %v1180
      %v1213 = vmul.f32 %v965, %v1181
      %v1214 = vmul.f32 %v967, %v1182
      %v1215 = vmul.f32 %v969, %v1183
      %v1216 = vmul.f32 %v971, %v1184
      %v1217 = vmul.f32 %v973, %v1185
      %v1218 = vmul.f32 %v975, %v1186
      %v1219 = vmul.f32 %v977, %v1187
      %v1220 = vmul.f32 %v979, %v1188
      %v1221 = vmul.f32 %v981, %v1189
      %v1222 = vmul.f32 %v983, %v1190
      %v1223 = vmul.f32 %v985, %v1191
      %v1224 = vmul.f32 %v987, %v1192
      %v1225 = vmul.f32 %v989, %v1193
      %v1226 = vmul.f32 %v991, %v1194
      %v1227 = vmul.f32 %v993, %v1195
      %v1228 = vmul.f32 %v995, %v1196
      %v1229 = vmul.f32 %v997, %v1197
      %v1230 = vmul.f32 %v999, %v1198
      %v1231 = vmul.f32 %v1001, %v1199
      %v1232 = vmul.f32 %v1003, %v1200
      %v1233 = vmul.f32 %v1005, %v1201
      %v1234 = vmul.f32 %v1007, %v1202
      %v1235 = vmul.f32 %v1009, %v1203
      %v1236 = vmul.f32 %v1011, %v1204
      %v1237 = vmul.f32 %v1013, %v1205
      %vm1238 = vcmask 64512
      %1239 = vst.msk [vmem:[%s226] sm:$0xff] %vm1238, %v1206
      %1240 = vst.msk [vmem:[%s226 + $0x8] sm:$0xff] %vm1238, %v1207
      %1241 = vst.msk [vmem:[%s226 + $0x10] sm:$0xff] %vm1238, %v1208
      %1242 = vst.msk [vmem:[%s226 + $0x18] sm:$0xff] %vm1238, %v1209
      %1243 = vst.msk [vmem:[%s226 + $0x20] sm:$0xff] %vm1238, %v1210
      %1244 = vst.msk [vmem:[%s226 + $0x28] sm:$0xff] %vm1238, %v1211
      %1245 = vst.msk [vmem:[%s226 + $0x30] sm:$0xff] %vm1238, %v1212
      %1246 = vst.msk [vmem:[%s226 + $0x38] sm:$0xff] %vm1238, %v1213
      %1247 = vst.msk [vmem:[%s226 + $0x40] sm:$0xff] %vm1238, %v1214
      %1248 = vst.msk [vmem:[%s226 + $0x48] sm:$0xff] %vm1238, %v1215
      %1249 = vst.msk [vmem:[%s226 + $0x50] sm:$0xff] %vm1238, %v1216
      %1250 = vst.msk [vmem:[%s226 + $0x58] sm:$0xff] %vm1238, %v1217
      %1251 = vst.msk [vmem:[%s226 + $0x60] sm:$0xff] %vm1238, %v1218
      %1252 = vst.msk [vmem:[%s226 + $0x68] sm:$0xff] %vm1238, %v1219
      %1253 = vst.msk [vmem:[%s226 + $0x70] sm:$0xff] %vm1238, %v1220
      %1254 = vst.msk [vmem:[%s226 + $0x78] sm:$0xff] %vm1238, %v1221
      %1255 = vst.msk [vmem:[%s226 + $0x80] sm:$0xff] %vm1238, %v1222
      %1256 = vst.msk [vmem:[%s226 + $0x88] sm:$0xff] %vm1238, %v1223
      %1257 = vst.msk [vmem:[%s226 + $0x90] sm:$0xff] %vm1238, %v1224
      %1258 = vst.msk [vmem:[%s226 + $0x98] sm:$0xff] %vm1238, %v1225
      %1259 = vst.msk [vmem:[%s226 + $0xa0] sm:$0xff] %vm1238, %v1226
      %1260 = vst.msk [vmem:[%s226 + $0xa8] sm:$0xff] %vm1238, %v1227
      %1261 = vst.msk [vmem:[%s226 + $0xb0] sm:$0xff] %vm1238, %v1228
      %1262 = vst.msk [vmem:[%s226 + $0xb8] sm:$0xff] %vm1238, %v1229
      %1263 = vst.msk [vmem:[%s226 + $0xc0] sm:$0xff] %vm1238, %v1230
      %1264 = vst.msk [vmem:[%s226 + $0xc8] sm:$0xff] %vm1238, %v1231
      %1265 = vst.msk [vmem:[%s226 + $0xd0] sm:$0xff] %vm1238, %v1232
      %1266 = vst.msk [vmem:[%s226 + $0xd8] sm:$0xff] %vm1238, %v1233
      %1267 = vst.msk [vmem:[%s226 + $0xe0] sm:$0xff] %vm1238, %v1234
      %1268 = vst.msk [vmem:[%s226 + $0xe8] sm:$0xff] %vm1238, %v1235
      %1269 = vst.msk [vmem:[%s226 + $0xf0] sm:$0xff] %vm1238, %v1236
      %1270 = vst.msk [vmem:[%s226 + $0xf8] sm:$0xff] %vm1238, %v1237
      %s1271 = smul.u32 32, %s16
      %p1272 = scmp.lt.s32.totalorder %s1271, 127
      %s1273 = scalar_select %p1272, %s1271, 127
      %s1274 = smul.addr %s1273, 8
      %s1275 = scalar_lea.vmem %s5, %s1274
      // Predicated region
      $region41: #{gmm_forward.1} parent=39 // pred_check
        %p1276 = pneg %p144
      $region42: #{gmm_forward.1} parent=39 // pred_check_branch
        %1278 = sbr.rel (%p1276) target = $region44
      $region43: #{gmm_forward.1} parent=39 // pred_region
        %s1279 = smul.u32 32, %s16
      $region44: #{gmm_forward.1} parent=39 // pred_fallthru
        _
    $region40: #{gmm_forward.1} parent=5 // pred_fallthru
      _
    %p1280 = scmp.le.s32.totalorder 2, %s11
    // Predicated region
    $region45: #{gmm_forward.1} parent=5 // pred_check
      %p1281 = pneg %p1280
    $region46: #{gmm_forward.1} parent=5 // pred_check_branch
      %1283 = sbr.rel (%p1281) target = $region48
    $region47: #{gmm_forward.1} parent=5 // pred_region
      %s1284 = ssub.s32 %s11, 2
      // Predicated region
      $region49: #{gmm_forward.1} parent=47 // pred_check
        %p1285 = pneg %p150
      $region50: #{gmm_forward.1} parent=47 // pred_check_branch
        %1287 = sbr.rel (%p1285) target = $region52
      $region51: #{gmm_forward.1} parent=47 // pred_region
        %s1288 = smul.u32 32, %s17
        %p1289 = scmp.lt.s32.totalorder %s1288, 127
        %s1290 = scalar_select %p1289, %s1288, 127
        %s1291 = smul.addr %s1290, 8
        %s1292 = scalar_lea.vmem %s5, %s1291
      $region52: #{gmm_forward.1} parent=47 // pred_fallthru
        _
    $region48: #{gmm_forward.1} parent=5 // pred_fallthru
      _
  $region6: #{gmm_forward.1} parent=0 // loop_footer
    %s15 = sadd.s32 1, %s11
  $region7: #{gmm_forward.1} parent=0 // loop_footer_branch
    %10 = sbr.rel target = $region3
  $region8: #{gmm_forward.1} parent=0 // loop_exit
    _

</llo_original>
